<compile_context>
chip_gen: v7x
topology: tpu7x:2x2x1
jax: 0.10.0
libtpu: 0.0.40
codegen_flags: <defaults>
</compile_context>

<pallas_src>
import math

import numpy as np
import jax
import jax.numpy as jnp
from jax.experimental import pallas as pl
from jax.experimental.pallas import tpu as pltpu


def equal_channel_split(c2, n):
    # replicates: i = torch.linspace(0, n - 1e-6, c2).floor(); count per group
    i = np.floor(np.linspace(0.0, n - 1e-6, c2)).astype(np.int64)
    return [int((i == g).sum()) for g in range(n)]


def build_params(key, c1, c2, k_list):
    """Deterministic param init. Returns merged dense weight (OIHW, KMAX),
    per-branch weights (for the pure-JAX reference), and BN gamma/beta."""
    assert all(kk % 2 == 1 for kk in k_list), "merged dense conv needs odd k"
    n = len(k_list)
    c_list = equal_channel_split(c2, n)
    kmax = max(k_list)
    keys = jax.random.split(key, n + 2)

    merged = np.zeros((c2, c1, kmax, kmax), np.float32)  # OIHW
    branches = []
    off = 0
    for bi, (kk, cg) in enumerate(zip(k_list, c_list)):
        g = math.gcd(c1, cg)
        w = 0.1 * jax.random.normal(keys[bi], (cg, c1 // g, kk, kk), jnp.float32)
        branches.append(dict(w=w, groups=g, k=kk))
        wn = np.asarray(w)
        pad = (kmax - kk) // 2
        in_pg, out_pg = c1 // g, cg // g
        for j in range(g):
            merged[off + j * out_pg: off + (j + 1) * out_pg,
                   j * in_pg: (j + 1) * in_pg,
                   pad: pad + kk, pad: pad + kk] = wn[j * out_pg:(j + 1) * out_pg]
        off += cg

    gamma = 1.0 + 0.1 * jax.random.normal(keys[n], (c2,), jnp.float32)
    beta = 0.1 * jax.random.normal(keys[n + 1], (c2,), jnp.float32)
    return jnp.asarray(merged), branches, gamma, beta


# ---------------------------------------------------------------------------
# Pass 1: per-tile im2col conv (single MXU matmul) + per-tile BN partials.
# ---------------------------------------------------------------------------
def _conv_stats_kernel(w_ref, p_ref, y_ref, sum_ref, ssq_ref):
    # w_ref:   (C2, KF)   matmul operand (bf16 or f32)
    # p_ref:   (KF, TM)   patch-matrix tile (lane axis = M, dense)
    # y_ref:   (C2, TM)   f32 conv output tile (lane-dense store)
    # sum_ref / ssq_ref: (1, C2, 1) per-tile partial BN statistics
    acc = jnp.dot(w_ref[...], p_ref[...], preferred_element_type=jnp.float32)
    y_ref[...] = acc
    sum_ref[...] = jnp.sum(acc, axis=-1, keepdims=True)[None]
    ssq_ref[...] = jnp.sum(acc * acc, axis=-1, keepdims=True)[None]


# ---------------------------------------------------------------------------
# Pass 2: per-tile normalize (folded scale/shift) + SiLU.
# ---------------------------------------------------------------------------
def _bn_silu_kernel(y_ref, scale_ref, shift_ref, o_ref):
    # y_ref: (C2, TM) f32; scale/shift: (C2, 1); o_ref: (C2, TM)
    y = y_ref[...]
    yn = y * scale_ref[...] + shift_ref[...]
    o_ref[...] = (yn * (1.0 / (1.0 + jnp.exp(-yn)))).astype(o_ref.dtype)


def mixconv2d_forward(x_nchw, w_merged, gamma, beta, *,
                      matmul_dtype=jnp.bfloat16, tile_m=256, eps=1e-5):
    n, c1, h, w = x_nchw.shape
    c2, c1w, kmax, kmax2 = w_merged.shape
    assert c1w == c1 and kmax == kmax2
    assert kmax % 2 == 1, "merged dense-conv trick assumes odd kernel sizes"
    p = kmax // 2
    kf = kmax * kmax * c1
    m = n * h * w

    # im2col in the wrapper: pad + static slices + concat (unambiguous order:
    # row index = (kh*KMAX + kw)*C1 + c1, column index = (n, h, w)).
    # TODO(synk): at large KMAX/C1 build the patch tile in-kernel with a
    # layout-friendly gather to avoid the KMAX^2x HBM expansion of im2col.
    xp = jnp.pad(x_nchw, ((0, 0), (0, 0), (p, p), (p, p)))
    cols = [xp[:, :, kh:kh + h, kw:kw + w]
            for kh in range(kmax) for kw in range(kmax)]        # (N,C1,H,W) each
    patches = jnp.concatenate(cols, axis=1)                     # (N, KF, H, W)
    patches_t = patches.transpose(1, 0, 2, 3).reshape(kf, m)    # (KF, M)

    # Tile M (lane axis) in multiples of 128; pad with zero columns (zero
    # patches give zero conv output, so the BN partial sums are unaffected).
    tm = min(tile_m, ((m + 127) // 128) * 128)
    m_pad = ((m + tm - 1) // tm) * tm
    num_tiles = m_pad // tm
    if m_pad != m:
        patches_t = jnp.pad(patches_t, ((0, 0), (0, m_pad - m)))

    # Flatten merged weight to (C2, KF) matching the patch row ordering.
    w_flat = jnp.transpose(w_merged, (0, 2, 3, 1)).reshape(c2, kf)

    w_mm = w_flat.astype(matmul_dtype)
    p_mm = patches_t.astype(matmul_dtype)

    # ---- Pass 1: conv tiles + per-tile BN partial sums ---------------------
    y_t, psum, pssq = pl.pallas_call(
        _conv_stats_kernel,
        out_shape=(
            jax.ShapeDtypeStruct((c2, m_pad), jnp.float32),
            jax.ShapeDtypeStruct((num_tiles, c2, 1), jnp.float32),
            jax.ShapeDtypeStruct((num_tiles, c2, 1), jnp.float32),
        ),
        grid=(num_tiles,),
        in_specs=[
            pl.BlockSpec((c2, kf), lambda i: (0, 0)),     # weight (resident)
            pl.BlockSpec((kf, tm), lambda i: (0, i)),     # patch tile
        ],
        out_specs=(
            pl.BlockSpec((c2, tm), lambda i: (0, i)),     # conv output tile
            pl.BlockSpec((1, c2, 1), lambda i: (i, 0, 0)),
            pl.BlockSpec((1, c2, 1), lambda i: (i, 0, 0)),
        ),
        compiler_params=pltpu.CompilerParams(
            dimension_semantics=("parallel",)),
    )(w_mm, p_mm)

    # ---- Fold training-mode BN stats + gamma/beta into scale/shift ---------
    m_f = jnp.float32(m)  # true element count (padded columns contributed 0)
    mean = jnp.sum(psum[:, :, 0], axis=0) / m_f
    ex2 = jnp.sum(pssq[:, :, 0], axis=0) / m_f
    var = ex2 - mean * mean                       # biased variance (training BN)
    scale = gamma.astype(jnp.float32) * jax.lax.rsqrt(var + eps)
    shift = beta.astype(jnp.float32) - mean * scale

    # ---- Pass 2: normalize + SiLU per tile ---------------------------------
    out_t = pl.pallas_call(
        _bn_silu_kernel,
        out_shape=jax.ShapeDtypeStruct((c2, m_pad), jnp.float32),
        grid=(num_tiles,),
        in_specs=[
            pl.BlockSpec((c2, tm), lambda i: (0, i)),
            pl.BlockSpec((c2, 1), lambda i: (0, 0)),
            pl.BlockSpec((c2, 1), lambda i: (0, 0)),
        ],
        out_specs=pl.BlockSpec((c2, tm), lambda i: (0, i)),
        compiler_params=pltpu.CompilerParams(
            dimension_semantics=("parallel",)),
    )(y_t, scale.reshape(c2, 1), shift.reshape(c2, 1))

    out = out_t[:, :m].reshape(c2, n, h, w)
    return jnp.transpose(out, (1, 0, 2, 3))       # back to NCHW


def mixconv2d_reference(x_nchw, branches, gamma, beta):
    """Pure-JAX reference mirroring the PyTorch forward (grouped convs per
    branch, concat, training-mode BN, SiLU)."""
    outs = []
    for br in branches:
        kk = br["k"]
        p = kk // 2
        y = jax.lax.conv_general_dilated(
            x_nchw, br["w"], window_strides=(1, 1),
            padding=[(p, p), (p, p)],
            dimension_numbers=("NCHW", "OIHW", "NCHW"),
            feature_group_count=br["groups"])
        outs.append(y)
    y = jnp.concatenate(outs, axis=1)
    mean = jnp.mean(y, axis=(0, 2, 3), keepdims=True)
    var = jnp.mean((y - mean) ** 2, axis=(0, 2, 3), keepdims=True)
    yn = (y - mean) * jax.lax.rsqrt(var + 1e-5) \
        * gamma.reshape(1, -1, 1, 1) + beta.reshape(1, -1, 1, 1)
    return yn * jax.nn.sigmoid(yn)


if __name__ == "__main__":
    key = jax.random.PRNGKey(0)
    kx, kp = jax.random.split(key)

    N, C1, H, W = 2, 4, 16, 16
    C2, K = 8, (1, 3)          # MixConv2d(c1=4, c2=8, k=(1,3), s=1, equal_ch=True)

    x = jax.random.normal(kx, (N, C1, H, W), jnp.float32)
    w_merged, branches, gamma, beta = build_params(kp, C1, C2, K)

    fwd = jax.jit(mixconv2d_forward,
                  static_argnames=("matmul_dtype", "tile_m", "eps"))

    ref = jax.block_until_ready(mixconv2d_reference(x, branches, gamma, beta))

    # f32 MXU operands: tight check.
    out_f32 = jax.block_until_ready(
        fwd(x, w_merged, gamma, beta, matmul_dtype=jnp.float32))
    assert out_f32.shape == (N, C2, H, W)
    np.testing.assert_allclose(np.asarray(out_f32), np.asarray(ref),
                               rtol=1e-4, atol=1e-4)

    # bf16 MXU operands (native v6e/v7x path, f32 accumulation): loose check.
    out_bf16 = jax.block_until_ready(
        fwd(x, w_merged, gamma, beta, matmul_dtype=jnp.bfloat16))
    np.testing.assert_allclose(np.asarray(out_bf16), np.asarray(ref),
                               rtol=5e-2, atol=5e-2)

    print("KERNEL_OK")
</pallas_src>

<mosaic_0001>
module attributes {stable_mosaic.version = 11 : i64} {
  func.func @_conv_stats_kernel(%arg0: i32, %arg1: memref<8x36xf32, #tpu.memory_space<vmem>>, %arg2: memref<36x256xf32, #tpu.memory_space<vmem>>, %arg3: memref<8x256xf32, #tpu.memory_space<vmem>>, %arg4: memref<1x8x1xf32, #tpu.memory_space<vmem>>, %arg5: memref<1x8x1xf32, #tpu.memory_space<vmem>>) attributes {dimension_semantics = [#tpu.dimension_semantics<parallel>], iteration_bounds = array<i64: 2>, scalar_prefetch = 0 : i64, scratch_operands = 0 : i64, tpu.core_type = #tpu.core_type<tc>, window_params = [{pipeline_mode = #tpu.pipeline_mode<synchronous>, transform_indices = @transform_0, window_bounds = array<i64: 8, 36>}, {transform_indices = @transform_1, window_bounds = array<i64: 36, 256>}, {transform_indices = @transform_2, window_bounds = array<i64: 8, 256>}, {transform_indices = @transform_3, window_bounds = array<i64: 1, 8, 1>}, {transform_indices = @transform_4, window_bounds = array<i64: 1, 8, 1>}]} {
    %c0 = arith.constant 0 : index
    %c0_0 = arith.constant 0 : index
    %0 = vector.load %arg1[%c0, %c0_0] : memref<8x36xf32, #tpu.memory_space<vmem>>, vector<8x36xf32>
    %c0_1 = arith.constant 0 : index
    %c0_2 = arith.constant 0 : index
    %1 = vector.load %arg2[%c0_1, %c0_2] : memref<36x256xf32, #tpu.memory_space<vmem>>, vector<36x256xf32>
    %cst = arith.constant dense<0.000000e+00> : vector<8x256xf32>
    %2 = tpu.matmul %0, %1, %cst {dimension_numbers = #tpu.dot_dimension_numbers<[1], [0], [0], [1], [0, 0, 1, 1], [], []>} : vector<8x36xf32>, vector<36x256xf32>, vector<8x256xf32> -> vector<8x256xf32>
    %c0_3 = arith.constant 0 : index
    %c0_4 = arith.constant 0 : index
    %3 = vector.load %arg3[%c0_3, %c0_4] : memref<8x256xf32, #tpu.memory_space<vmem>>, vector<8x256xf32>
    tpu.vector_store %arg3[%c0_3, %c0_4], %2 {strides = array<i32>} : memref<8x256xf32, #tpu.memory_space<vmem>>, vector<8x256xf32>,
    %cst_5 = arith.constant dense<0.000000e+00> : vector<8xf32>
    %4 = vector.multi_reduction <add>, %2, %cst_5 [1] : vector<8x256xf32> to vector<8xf32>
    %5 = vector.shape_cast %4 : vector<8xf32> to vector<8x1xf32>
    %6 = vector.shape_cast %5 : vector<8x1xf32> to vector<1x8x1xf32>
    %c0_6 = arith.constant 0 : index
    %c0_7 = arith.constant 0 : index
    %c0_8 = arith.constant 0 : index
    %7 = vector.load %arg4[%c0_6, %c0_7, %c0_8] : memref<1x8x1xf32, #tpu.memory_space<vmem>>, vector<1x8x1xf32>
    tpu.vector_store %arg4[%c0_6, %c0_7, %c0_8], %6 {strides = array<i32>} : memref<1x8x1xf32, #tpu.memory_space<vmem>>, vector<1x8x1xf32>,
    %8 = arith.mulf %2, %2 : vector<8x256xf32>
    %cst_9 = arith.constant dense<0.000000e+00> : vector<8xf32>
    %9 = vector.multi_reduction <add>, %8, %cst_9 [1] : vector<8x256xf32> to vector<8xf32>
    %10 = vector.shape_cast %9 : vector<8xf32> to vector<8x1xf32>
    %11 = vector.shape_cast %10 : vector<8x1xf32> to vector<1x8x1xf32>
    %c0_10 = arith.constant 0 : index
    %c0_11 = arith.constant 0 : index
    %c0_12 = arith.constant 0 : index
    %12 = vector.load %arg5[%c0_10, %c0_11, %c0_12] : memref<1x8x1xf32, #tpu.memory_space<vmem>>, vector<1x8x1xf32>
    tpu.vector_store %arg5[%c0_10, %c0_11, %c0_12], %11 {strides = array<i32>} : memref<1x8x1xf32, #tpu.memory_space<vmem>>, vector<1x8x1xf32>,
    return
  }
  func.func @transform_0(%arg0: i32) -> (i32, i32) {
    %c0_i32 = arith.constant 0 : i32
    %c0_i32_0 = arith.constant 0 : i32
    %c0_i32_1 = arith.constant 0 : i32
    return %c0_i32, %c0_i32_0 : i32, i32
  }
  func.func @transform_1(%arg0: i32) -> (i32, i32) {
    %c0_i32 = arith.constant 0 : i32
    %c0_i32_0 = arith.constant 0 : i32
    return %c0_i32, %arg0 : i32, i32
  }
  func.func @transform_2(%arg0: i32) -> (i32, i32) {
    %c0_i32 = arith.constant 0 : i32
    %c0_i32_0 = arith.constant 0 : i32
    return %c0_i32, %arg0 : i32, i32
  }
  func.func @transform_3(%arg0: i32) -> (i32, i32, i32) {
    %c0_i32 = arith.constant 0 : i32
    %c0_i32_0 = arith.constant 0 : i32
    %c0_i32_1 = arith.constant 0 : i32
    return %arg0, %c0_i32, %c0_i32_0 : i32, i32, i32
  }
  func.func @transform_4(%arg0: i32) -> (i32, i32, i32) {
    %c0_i32 = arith.constant 0 : i32
    %c0_i32_0 = arith.constant 0 : i32
    %c0_i32_1 = arith.constant 0 : i32
    return %arg0, %c0_i32, %c0_i32_0 : i32, i32, i32
  }
}

module attributes {stable_mosaic.version = 11 : i64} {
  func.func @_bn_silu_kernel(%arg0: i32, %arg1: memref<8x256xf32, #tpu.memory_space<vmem>>, %arg2: memref<8x1xf32, #tpu.memory_space<vmem>>, %arg3: memref<8x1xf32, #tpu.memory_space<vmem>>, %arg4: memref<8x256xf32, #tpu.memory_space<vmem>>) attributes {dimension_semantics = [#tpu.dimension_semantics<parallel>], iteration_bounds = array<i64: 2>, scalar_prefetch = 0 : i64, scratch_operands = 0 : i64, tpu.core_type = #tpu.core_type<tc>, window_params = [{transform_indices = @transform_0, window_bounds = array<i64: 8, 256>}, {pipeline_mode = #tpu.pipeline_mode<synchronous>, transform_indices = @transform_1, window_bounds = array<i64: 8, 1>}, {pipeline_mode = #tpu.pipeline_mode<synchronous>, transform_indices = @transform_2, window_bounds = array<i64: 8, 1>}, {transform_indices = @transform_3, window_bounds = array<i64: 8, 256>}]} {
    %c0 = arith.constant 0 : index
    %c0_0 = arith.constant 0 : index
    %0 = vector.load %arg1[%c0, %c0_0] : memref<8x256xf32, #tpu.memory_space<vmem>>, vector<8x256xf32>
    %c0_1 = arith.constant 0 : index
    %c0_2 = arith.constant 0 : index
    %1 = vector.load %arg2[%c0_1, %c0_2] : memref<8x1xf32, #tpu.memory_space<vmem>>, vector<8x1xf32>
    %2 = vector.broadcast %1 : vector<8x1xf32> to vector<8x256xf32>
    %3 = arith.mulf %0, %2 : vector<8x256xf32>
    %c0_3 = arith.constant 0 : index
    %c0_4 = arith.constant 0 : index
    %4 = vector.load %arg3[%c0_3, %c0_4] : memref<8x1xf32, #tpu.memory_space<vmem>>, vector<8x1xf32>
    %5 = vector.broadcast %4 : vector<8x1xf32> to vector<8x256xf32>
    %6 = arith.addf %3, %5 : vector<8x256xf32>
    %cst = arith.constant 0.000000e+00 : f32
    %7 = vector.broadcast %cst : f32 to vector<8x256xf32>
    %8 = arith.subf %7, %6 : vector<8x256xf32>
    %9 = math.exp %8 : vector<8x256xf32>
    %cst_5 = arith.constant 1.000000e+00 : f32
    %10 = vector.broadcast %cst_5 : f32 to vector<8x256xf32>
    %11 = arith.addf %10, %9 : vector<8x256xf32>
    %cst_6 = arith.constant 1.000000e+00 : f32
    %12 = vector.broadcast %cst_6 : f32 to vector<8x256xf32>
    %13 = arith.divf %12, %11 : vector<8x256xf32>
    %14 = arith.mulf %6, %13 : vector<8x256xf32>
    %c0_7 = arith.constant 0 : index
    %c0_8 = arith.constant 0 : index
    %15 = vector.load %arg4[%c0_7, %c0_8] : memref<8x256xf32, #tpu.memory_space<vmem>>, vector<8x256xf32>
    tpu.vector_store %arg4[%c0_7, %c0_8], %14 {strides = array<i32>} : memref<8x256xf32, #tpu.memory_space<vmem>>, vector<8x256xf32>,
    return
  }
  func.func @transform_0(%arg0: i32) -> (i32, i32) {
    %c0_i32 = arith.constant 0 : i32
    %c0_i32_0 = arith.constant 0 : i32
    return %c0_i32, %arg0 : i32, i32
  }
  func.func @transform_1(%arg0: i32) -> (i32, i32) {
    %c0_i32 = arith.constant 0 : i32
    %c0_i32_0 = arith.constant 0 : i32
    %c0_i32_1 = arith.constant 0 : i32
    return %c0_i32, %c0_i32_0 : i32, i32
  }
  func.func @transform_2(%arg0: i32) -> (i32, i32) {
    %c0_i32 = arith.constant 0 : i32
    %c0_i32_0 = arith.constant 0 : i32
    %c0_i32_1 = arith.constant 0 : i32
    return %c0_i32, %c0_i32_0 : i32, i32
  }
  func.func @transform_3(%arg0: i32) -> (i32, i32) {
    %c0_i32 = arith.constant 0 : i32
    %c0_i32_0 = arith.constant 0 : i32
    return %c0_i32, %arg0 : i32, i32
  }
}

</mosaic_0001>

<llo_original>
// kernel: mixconv2d_forward.3
$region0: #{mixconv2d_forward.3}
  #allocation0 [shape = 'u32[]', space=smem, size = 0x4, offset = 0x4, fixed_abs, tag = 'smem constant byte address 0x4 - core index']
  #allocation1 [shape = 'u32[144,128]{1,0:T(1,128)}', space=vmem, size = 0x12000, scoped, tag = 'internal scratch']
  %s0 = inlined_call_operand.vmem [shape: f32[8,512], index: 0, kind: input, shape index: {}]
  %s1 = inlined_call_operand.vmem [shape: f32[8,1], index: 1, kind: input, shape index: {}]
  %s2 = inlined_call_operand.vmem [shape: f32[8,1], index: 2, kind: input, shape index: {}]
  %s3 = inlined_call_operand.vmem [shape: f32[8,512], index: 3, kind: output, shape index: {}]
  %s4 = sld [smem:[#allocation0]]
  $region45: #{mixconv2d_forward.3} parent=0
    _
  %s6 = ssub.s32 1, %s4
  %s7 = scalar_select 0, %s6, %s4
  loop: start=0, step=1, limit=4
  $region2: #{mixconv2d_forward.3} parent=0 // loop_pre_header
    _
  $region3: #{mixconv2d_forward.3} parent=0 // loop_header
    %s9 = sphi 0, %s13
    %p10 = scmp.ge.s32.totalorder %s9, 4
    %s19 = sphi 0, %s21
    %s22 = sphi 0, %s19
    %s23 = sphi 0, %s22
    %s39 = sphi 0, %s23
    %s43 = sphi 0, %s43
    %s45 = sphi 0, %s43
    %s46 = sphi 0, %s45
    %s60 = sphi 0, %s46
    %s64 = sphi 0, %s64
    %s66 = sphi 0, %s64
    %s67 = sphi 0, %s66
    %s81 = sphi 0, %s67
    %s87 = sphi 0, %s89
    %s90 = sphi 0, %s87
    %s91 = sphi 0, %s90
    %s107 = sphi 0, %s91
  $region4: #{mixconv2d_forward.3} parent=0 // loop_header_branch
    %12 = sbr.rel (%p10) target = $region8
  $region5: #{mixconv2d_forward.3} parent=0 // loop_body
    %s14 = ssub.s32 %s9, 1
    %s15 = ssub.s32 %s9, 2
    %s16 = sadd.s32 %s9, 1
    %s17 = ssub.s32 %s9, %s16
    %p18 = scmp.eq.s32.totalorder %s17, 0
    %s20 = sadd.s32 %s19, 1
    %s21 = scalar_select %p18, %s19, %s20
    %p24 = pneg %p18
    %p25 = scmp.eq.s32.totalorder %s9, 1
    %p26 = por %p24, %p25
    %p27 = scmp.ne.s32.totalorder %s19, %s22
    %p28 = scmp.eq.s32.totalorder %s9, 0
    %p29 = por %p27, %p28
    %p30 = scmp.ne.s32.totalorder %s19, %s22
    %p31 = scmp.eq.s32.totalorder %s14, 1
    %p32 = por %p30, %p31
    %p33 = scmp.ne.s32.totalorder %s22, %s23
    %p34 = scmp.eq.s32.totalorder %s14, 0
    %p35 = por %p33, %p34
    %p36 = scmp.ne.s32.totalorder %s22, %s23
    %p37 = scmp.eq.s32.totalorder %s15, 1
    %p38 = por %p36, %p37
    %p40 = scmp.ne.s32.totalorder %s23, %s39
    %p41 = scmp.eq.s32.totalorder %s15, 0
    %p42 = por %p40, %p41
    %s44 = sadd.s32 %s43, 1
    %p47 = scmp.eq.s32.totalorder %s9, 1
    %p48 = scmp.ne.s32.totalorder %s43, %s45
    %p49 = scmp.eq.s32.totalorder %s9, 0
    %p50 = por %p48, %p49
    %p51 = scmp.ne.s32.totalorder %s43, %s45
    %p52 = scmp.eq.s32.totalorder %s14, 1
    %p53 = por %p51, %p52
    %p54 = scmp.ne.s32.totalorder %s45, %s46
    %p55 = scmp.eq.s32.totalorder %s14, 0
    %p56 = por %p54, %p55
    %p57 = scmp.ne.s32.totalorder %s45, %s46
    %p58 = scmp.eq.s32.totalorder %s15, 1
    %p59 = por %p57, %p58
    %p61 = scmp.ne.s32.totalorder %s46, %s60
    %p62 = scmp.eq.s32.totalorder %s15, 0
    %p63 = por %p61, %p62
    %s65 = sadd.s32 %s64, 1
    %p68 = scmp.eq.s32.totalorder %s9, 1
    %p69 = scmp.ne.s32.totalorder %s64, %s66
    %p70 = scmp.eq.s32.totalorder %s9, 0
    %p71 = por %p69, %p70
    %p72 = scmp.ne.s32.totalorder %s64, %s66
    %p73 = scmp.eq.s32.totalorder %s14, 1
    %p74 = por %p72, %p73
    %p75 = scmp.ne.s32.totalorder %s66, %s67
    %p76 = scmp.eq.s32.totalorder %s14, 0
    %p77 = por %p75, %p76
    %p78 = scmp.ne.s32.totalorder %s66, %s67
    %p79 = scmp.eq.s32.totalorder %s15, 1
    %p80 = por %p78, %p79
    %p82 = scmp.ne.s32.totalorder %s67, %s81
    %p83 = scmp.eq.s32.totalorder %s15, 0
    %p84 = por %p82, %p83
    %s85 = ssub.s32 %s9, %s16
    %p86 = scmp.eq.s32.totalorder %s85, 0
    %s88 = sadd.s32 %s87, 1
    %s89 = scalar_select %p86, %s87, %s88
    %p92 = pneg %p86
    %p93 = scmp.eq.s32.totalorder %s9, 1
    %p94 = por %p92, %p93
    %p95 = scmp.ne.s32.totalorder %s87, %s90
    %p96 = scmp.eq.s32.totalorder %s9, 0
    %p97 = por %p95, %p96
    %p98 = scmp.ne.s32.totalorder %s87, %s90
    %p99 = scmp.eq.s32.totalorder %s14, 1
    %p100 = por %p98, %p99
    %p101 = scmp.ne.s32.totalorder %s90, %s91
    %p102 = scmp.eq.s32.totalorder %s14, 0
    %p103 = por %p101, %p102
    %p104 = scmp.ne.s32.totalorder %s90, %s91
    %p105 = scmp.eq.s32.totalorder %s15, 1
    %p106 = por %p104, %p105
    %p108 = scmp.ne.s32.totalorder %s91, %s107
    %p109 = scmp.eq.s32.totalorder %s15, 0
    %p110 = por %p108, %p109
    %p111 = scmp.le.s32.totalorder 1, %s9
    %p112 = scmp.lt.s32.totalorder %s9, 3
    %p113 = pnand %p111, %p112
    %p114 = pneg %p113
    // Predicated region
    $region9: #{mixconv2d_forward.3} parent=5 // pred_check
      _
    $region10: #{mixconv2d_forward.3} parent=5 // pred_check_branch
      %116 = sbr.rel (%p113) target = $region12
    $region11: #{mixconv2d_forward.3} parent=5 // pred_region
      %s117 = ssub.s32 %s9, 1
      // Predicated region
      $region13: #{mixconv2d_forward.3} parent=11 // pred_check
        %p118 = pneg %p56
      $region14: #{mixconv2d_forward.3} parent=11 // pred_check_branch
        %120 = sbr.rel (%p118) target = $region16
      $region15: #{mixconv2d_forward.3} parent=11 // pred_region
        _
      $region16: #{mixconv2d_forward.3} parent=11 // pred_fallthru
        _
      // Predicated region
      $region17: #{mixconv2d_forward.3} parent=11 // pred_check
        %p121 = pneg %p77
      $region18: #{mixconv2d_forward.3} parent=11 // pred_check_branch
        %123 = sbr.rel (%p121) target = $region20
      $region19: #{mixconv2d_forward.3} parent=11 // pred_region
        _
      $region20: #{mixconv2d_forward.3} parent=11 // pred_fallthru
        _
    $region12: #{mixconv2d_forward.3} parent=5 // pred_fallthru
      _
    %p124 = scmp.lt.s32.totalorder %s9, 2
    // Predicated region
    $region21: #{mixconv2d_forward.3} parent=5 // pred_check
      %p125 = pneg %p124
    $region22: #{mixconv2d_forward.3} parent=5 // pred_check_branch
      %127 = sbr.rel (%p125) target = $region24
    $region23: #{mixconv2d_forward.3} parent=5 // pred_region
      // Predicated region
      $region25: #{mixconv2d_forward.3} parent=23 // pred_check
        %p128 = pneg %p29
      $region26: #{mixconv2d_forward.3} parent=23 // pred_check_branch
        %130 = sbr.rel (%p128) target = $region28
      $region27: #{mixconv2d_forward.3} parent=23 // pred_region
        %s131 = smul.u32 2, %s9
        %p132 = scmp.lt.s32.totalorder %s131, 3
        %s133 = scalar_select %p132, %s131, 3
        %s134 = smul.addr %s133, 8
        %s135 = scalar_lea.vmem %s0, %s134
        %s136 = smul.u32 2, %s9
      $region28: #{mixconv2d_forward.3} parent=23 // pred_fallthru
        _
    $region24: #{mixconv2d_forward.3} parent=5 // pred_fallthru
      _
    %p137 = scmp.le.s32.totalorder 1, %s9
    %p138 = scmp.lt.s32.totalorder %s9, 3
    %p139 = pnand %p137, %p138
    %p140 = pneg %p139
    // Predicated region
    $region29: #{mixconv2d_forward.3} parent=5 // pred_check
      _
    $region30: #{mixconv2d_forward.3} parent=5 // pred_check_branch
      %142 = sbr.rel (%p139) target = $region32
    $region31: #{mixconv2d_forward.3} parent=5 // pred_region
      %s143 = ssub.s32 %s9, 1
      %s144 = smul.u32 2, %s14
      %p145 = scmp.lt.s32.totalorder %s144, 3
      %s146 = scalar_select %p145, %s144, 3
      %s147 = smul.addr %s146, 8
      %s148 = scalar_lea.vmem %s0, %s147
      %p149 = pneg %p35
      %p150 = pneg %p32
      %p151 = pneg %p56
      %p152 = pneg %p53
      %p153 = pneg %p77
      %p154 = pneg %p74
      %p155 = pneg %p103
      %p156 = pneg %p100
      %s157 = smul.u32 2, %s14
      %p158 = scmp.lt.s32.totalorder %s157, 3
      %s159 = scalar_select %p158, %s157, 3
      %s160 = smul.addr %s159, 8
      %s161 = scalar_lea.vmem %s3, %s160
      %s162 = smul.u32 2, %s14
      %p163 = scmp.lt.s32.totalorder %s162, 3
      %s164 = scalar_select %p163, %s162, 3
      %s165 = smul.addr %s164, 8
      %s166 = scalar_lea.vmem %s0, %s165
      %s167 = smul.u32 2, %s14
      %s168 = smul.u32 2, %s14
      %p169 = scmp.lt.s32.totalorder %s168, 3
      %s170 = scalar_select %p169, %s168, 3
      %s171 = smul.addr %s170, 8
      %s172 = scalar_lea.vmem %s3, %s171
      %s173 = smul.u32 2, %s14
      %v174 = vld [vmem:[%s166] sm:$0xff]
      %v175 = vld [vmem:[%s166 + $0x8] sm:$0xff]
      %v176 = vld [vmem:[%s1] sm:$0xff]
      %178 = vset.pattern.permute.xlu0 0
      %179 = vperm.xlu0 %178, %v176
      %v180 = vpop.permute.xlu0 %179
      %v182 = vmul.f32 %v174, %v180
      %v183 = vmul.f32 %v175, %v180
      %v184 = vld [vmem:[%s2] sm:$0xff]
      %186 = vset.pattern.permute.xlu0 0
      %187 = vperm.xlu0 %186, %v184
      %v188 = vpop.permute.xlu0 %187
      %v190 = vadd.f32 %v182, %v188
      %v191 = vadd.f32 %v183, %v188
      %v192 = vsub.f32 0.0, %v190
      %v193 = vsub.f32 0.0, %v191
      %v194 = vmul.f32 %v192, 1.442695
      %v195 = vpow.pop %v194
      %v196 = vmul.f32 %v193, 1.442695
      %v197 = vpow.pop %v196
      %v198 = vadd.f32 %v195, 1.0
      %v199 = vadd.f32 %v197, 1.0
      %v200 = vrcp.pop %v198
      %v201 = vmul.f32 1.0, %v200
      %v202 = vrcp.pop %v199
      %v203 = vmul.f32 1.0, %v202
      %v204 = vmul.f32 %v190, %v201
      %v205 = vmul.f32 %v191, %v203
      %206 = vst [vmem:[%s172] sm:$0xff] %v204
      %207 = vst [vmem:[%s172 + $0x8] sm:$0xff] %v205
      %s208 = smul.u32 2, %s14
      %p209 = scmp.lt.s32.totalorder %s208, 3
      %s210 = scalar_select %p209, %s208, 3
      %s211 = smul.addr %s210, 8
      %s212 = scalar_lea.vmem %s3, %s211
      // Predicated region
      $region33: #{mixconv2d_forward.3} parent=31 // pred_check
        %p213 = pneg %p100
      $region34: #{mixconv2d_forward.3} parent=31 // pred_check_branch
        %215 = sbr.rel (%p213) target = $region36
      $region35: #{mixconv2d_forward.3} parent=31 // pred_region
        %s216 = smul.u32 2, %s14
      $region36: #{mixconv2d_forward.3} parent=31 // pred_fallthru
        _
    $region32: #{mixconv2d_forward.3} parent=5 // pred_fallthru
      _
    %p217 = scmp.le.s32.totalorder 2, %s9
    // Predicated region
    $region37: #{mixconv2d_forward.3} parent=5 // pred_check
      %p218 = pneg %p217
    $region38: #{mixconv2d_forward.3} parent=5 // pred_check_branch
      %220 = sbr.rel (%p218) target = $region40
    $region39: #{mixconv2d_forward.3} parent=5 // pred_region
      %s221 = ssub.s32 %s9, 2
      // Predicated region
      $region41: #{mixconv2d_forward.3} parent=39 // pred_check
        %p222 = pneg %p106
      $region42: #{mixconv2d_forward.3} parent=39 // pred_check_branch
        %224 = sbr.rel (%p222) target = $region44
      $region43: #{mixconv2d_forward.3} parent=39 // pred_region
        %s225 = smul.u32 2, %s15
        %p226 = scmp.lt.s32.totalorder %s225, 3
        %s227 = scalar_select %p226, %s225, 3
        %s228 = smul.addr %s227, 8
        %s229 = scalar_lea.vmem %s3, %s228
      $region44: #{mixconv2d_forward.3} parent=39 // pred_fallthru
        _
    $region40: #{mixconv2d_forward.3} parent=5 // pred_fallthru
      _
  $region6: #{mixconv2d_forward.3} parent=0 // loop_footer
    %s13 = sadd.s32 1, %s9
  $region7: #{mixconv2d_forward.3} parent=0 // loop_footer_branch
    %8 = sbr.rel target = $region3
  $region8: #{mixconv2d_forward.3} parent=0 // loop_exit
    _

// kernel: mixconv2d_forward.2
$region0: #{mixconv2d_forward.2}
  #allocation0 [shape = 'u32[]', space=smem, size = 0x4, offset = 0x4, fixed_abs, tag = 'smem constant byte address 0x4 - core index']
  #allocation1 [shape = 'u32[144,128]{1,0:T(1,128)}', space=vmem, size = 0x12000, scoped, tag = 'internal scratch']
  %s0 = inlined_call_operand.vmem [shape: f32[8,36], index: 0, kind: input, shape index: {}]
  %s1 = inlined_call_operand.vmem [shape: f32[36,512], index: 1, kind: input, shape index: {}]
  %s2 = inlined_call_operand.vmem [shape: f32[8,512], index: 2, kind: output, shape index: {0}]
  %s3 = inlined_call_operand.vmem [shape: f32[2,8,1], index: 3, kind: output, shape index: {1}]
  %s4 = inlined_call_operand.vmem [shape: f32[2,8,1], index: 4, kind: output, shape index: {2}]
  %5 = xla_tuple %s2, %s3, %s4
  %s6 = sld [smem:[#allocation0]]
  $region80: #{mixconv2d_forward.2} parent=0
    _
  %s8 = ssub.s32 1, %s6
  %s9 = scalar_select 0, %s8, %s6
  $region1: #{mixconv2d_forward.2} parent=0
    #allocation2 [shape = 'u8[81920]{0}', space=vmem, size = 0x14000, scoped, tag = 'input window, operand 1']
    loop: start=0, step=1, limit=4
    $region2: #{mixconv2d_forward.2} parent=1 // loop_pre_header
      _
    $region3: #{mixconv2d_forward.2} parent=1 // loop_header
      %s11 = sphi 0, %s15
      %p12 = scmp.ge.s32.totalorder %s11, 4
      %s19 = sphi 0, %s19
      %s21 = sphi 0, %s19
      %s22 = sphi 0, %s21
      %s36 = sphi 0, %s22
      %s42 = sphi 0, %s44
      %s45 = sphi 0, %s42
      %s46 = sphi 0, %s45
      %s62 = sphi 0, %s46
      %s68 = sphi 0, %s70
      %s71 = sphi 0, %s68
      %s72 = sphi 0, %s71
      %s88 = sphi 0, %s72
      %s94 = sphi 0, %s96
      %s97 = sphi 0, %s94
      %s98 = sphi 0, %s97
      %s114 = sphi 0, %s98
      %s120 = sphi 0, %s122
      %s123 = sphi 0, %s120
      %s124 = sphi 0, %s123
      %s140 = sphi 0, %s124
    $region4: #{mixconv2d_forward.2} parent=1 // loop_header_branch
      %14 = sbr.rel (%p12) target = $region8
    $region5: #{mixconv2d_forward.2} parent=1 // loop_body
      %s16 = ssub.s32 %s11, 1
      %s17 = ssub.s32 %s11, 2
      %s18 = sadd.s32 %s11, 1
      %s20 = sadd.s32 %s19, 1
      %p23 = scmp.eq.s32.totalorder %s11, 1
      %p24 = scmp.ne.s32.totalorder %s19, %s21
      %p25 = scmp.eq.s32.totalorder %s11, 0
      %p26 = por %p24, %p25
      %p27 = scmp.ne.s32.totalorder %s19, %s21
      %p28 = scmp.eq.s32.totalorder %s16, 1
      %p29 = por %p27, %p28
      %p30 = scmp.ne.s32.totalorder %s21, %s22
      %p31 = scmp.eq.s32.totalorder %s16, 0
      %p32 = por %p30, %p31
      %p33 = scmp.ne.s32.totalorder %s21, %s22
      %p34 = scmp.eq.s32.totalorder %s17, 1
      %p35 = por %p33, %p34
      %p37 = scmp.ne.s32.totalorder %s22, %s36
      %p38 = scmp.eq.s32.totalorder %s17, 0
      %p39 = por %p37, %p38
      %s40 = ssub.s32 %s11, %s18
      %p41 = scmp.eq.s32.totalorder %s40, 0
      %s43 = sadd.s32 %s42, 1
      %s44 = scalar_select %p41, %s42, %s43
      %p47 = pneg %p41
      %p48 = scmp.eq.s32.totalorder %s11, 1
      %p49 = por %p47, %p48
      %p50 = scmp.ne.s32.totalorder %s42, %s45
      %p51 = scmp.eq.s32.totalorder %s11, 0
      %p52 = por %p50, %p51
      %p53 = scmp.ne.s32.totalorder %s42, %s45
      %p54 = scmp.eq.s32.totalorder %s16, 1
      %p55 = por %p53, %p54
      %p56 = scmp.ne.s32.totalorder %s45, %s46
      %p57 = scmp.eq.s32.totalorder %s16, 0
      %p58 = por %p56, %p57
      %p59 = scmp.ne.s32.totalorder %s45, %s46
      %p60 = scmp.eq.s32.totalorder %s17, 1
      %p61 = por %p59, %p60
      %p63 = scmp.ne.s32.totalorder %s46, %s62
      %p64 = scmp.eq.s32.totalorder %s17, 0
      %p65 = por %p63, %p64
      %s66 = ssub.s32 %s11, %s18
      %p67 = scmp.eq.s32.totalorder %s66, 0
      %s69 = sadd.s32 %s68, 1
      %s70 = scalar_select %p67, %s68, %s69
      %p73 = pneg %p67
      %p74 = scmp.eq.s32.totalorder %s11, 1
      %p75 = por %p73, %p74
      %p76 = scmp.ne.s32.totalorder %s68, %s71
      %p77 = scmp.eq.s32.totalorder %s11, 0
      %p78 = por %p76, %p77
      %p79 = scmp.ne.s32.totalorder %s68, %s71
      %p80 = scmp.eq.s32.totalorder %s16, 1
      %p81 = por %p79, %p80
      %p82 = scmp.ne.s32.totalorder %s71, %s72
      %p83 = scmp.eq.s32.totalorder %s16, 0
      %p84 = por %p82, %p83
      %p85 = scmp.ne.s32.totalorder %s71, %s72
      %p86 = scmp.eq.s32.totalorder %s17, 1
      %p87 = por %p85, %p86
      %p89 = scmp.ne.s32.totalorder %s72, %s88
      %p90 = scmp.eq.s32.totalorder %s17, 0
      %p91 = por %p89, %p90
      %s92 = ssub.s32 %s11, %s18
      %p93 = scmp.eq.s32.totalorder %s92, 0
      %s95 = sadd.s32 %s94, 1
      %s96 = scalar_select %p93, %s94, %s95
      %p99 = pneg %p93
      %p100 = scmp.eq.s32.totalorder %s11, 1
      %p101 = por %p99, %p100
      %p102 = scmp.ne.s32.totalorder %s94, %s97
      %p103 = scmp.eq.s32.totalorder %s11, 0
      %p104 = por %p102, %p103
      %p105 = scmp.ne.s32.totalorder %s94, %s97
      %p106 = scmp.eq.s32.totalorder %s16, 1
      %p107 = por %p105, %p106
      %p108 = scmp.ne.s32.totalorder %s97, %s98
      %p109 = scmp.eq.s32.totalorder %s16, 0
      %p110 = por %p108, %p109
      %p111 = scmp.ne.s32.totalorder %s97, %s98
      %p112 = scmp.eq.s32.totalorder %s17, 1
      %p113 = por %p111, %p112
      %p115 = scmp.ne.s32.totalorder %s98, %s114
      %p116 = scmp.eq.s32.totalorder %s17, 0
      %p117 = por %p115, %p116
      %s118 = ssub.s32 %s11, %s18
      %p119 = scmp.eq.s32.totalorder %s118, 0
      %s121 = sadd.s32 %s120, 1
      %s122 = scalar_select %p119, %s120, %s121
      %p125 = pneg %p119
      %p126 = scmp.eq.s32.totalorder %s11, 1
      %p127 = por %p125, %p126
      %p128 = scmp.ne.s32.totalorder %s120, %s123
      %p129 = scmp.eq.s32.totalorder %s11, 0
      %p130 = por %p128, %p129
      %p131 = scmp.ne.s32.totalorder %s120, %s123
      %p132 = scmp.eq.s32.totalorder %s16, 1
      %p133 = por %p131, %p132
      %p134 = scmp.ne.s32.totalorder %s123, %s124
      %p135 = scmp.eq.s32.totalorder %s16, 0
      %p136 = por %p134, %p135
      %p137 = scmp.ne.s32.totalorder %s123, %s124
      %p138 = scmp.eq.s32.totalorder %s17, 1
      %p139 = por %p137, %p138
      %p141 = scmp.ne.s32.totalorder %s124, %s140
      %p142 = scmp.eq.s32.totalorder %s17, 0
      %p143 = por %p141, %p142
      %p144 = scmp.le.s32.totalorder 1, %s11
      %p145 = scmp.lt.s32.totalorder %s11, 3
      %p146 = pnand %p144, %p145
      %p147 = pneg %p146
      // Predicated region
      $region9: #{mixconv2d_forward.2} parent=5 // pred_check
        _
      $region10: #{mixconv2d_forward.2} parent=5 // pred_check_branch
        %149 = sbr.rel (%p146) target = $region12
      $region11: #{mixconv2d_forward.2} parent=5 // pred_region
        %s150 = ssub.s32 %s11, 1
        // Predicated region
        $region13: #{mixconv2d_forward.2} parent=11 // pred_check
          %p151 = pneg %p32
        $region14: #{mixconv2d_forward.2} parent=11 // pred_check_branch
          %153 = sbr.rel (%p151) target = $region16
        $region15: #{mixconv2d_forward.2} parent=11 // pred_region
          _
        $region16: #{mixconv2d_forward.2} parent=11 // pred_fallthru
          _
      $region12: #{mixconv2d_forward.2} parent=5 // pred_fallthru
        _
      %p154 = scmp.lt.s32.totalorder %s11, 2
      // Predicated region
      $region17: #{mixconv2d_forward.2} parent=5 // pred_check
        %p155 = pneg %p154
      $region18: #{mixconv2d_forward.2} parent=5 // pred_check_branch
        %157 = sbr.rel (%p155) target = $region20
      $region19: #{mixconv2d_forward.2} parent=5 // pred_region
        // Predicated region
        $region21: #{mixconv2d_forward.2} parent=19 // pred_check
          %p158 = pneg %p52
        $region22: #{mixconv2d_forward.2} parent=19 // pred_check_branch
          %160 = sbr.rel (%p158) target = $region24
        $region23: #{mixconv2d_forward.2} parent=19 // pred_region
          %s161 = sand.u32 %s42, 1
          %s162 = sand.u32 %s42, 1
          %s163 = smul.addr %s162, 80
          %s164 = scalar_lea.vmem [#allocation2], %s163
          %s165 = smul.u32 2, %s11
          %s166 = smul.addr %s165, 8
          %s167 = scalar_lea.vmem %s1, %s166
          // Predicated region
          $region25: #{mixconv2d_forward.2} parent=23 // pred_check
            _
          $region26: #{mixconv2d_forward.2} parent=23 // pred_check_branch
            %169 = sbr.rel (0) target = $region28
          $region27: #{mixconv2d_forward.2} parent=23 // pred_region
            // Predicated region
            $region29: #{mixconv2d_forward.2} parent=27 // pred_check
              _
            $region30: #{mixconv2d_forward.2} parent=27 // pred_check_branch
              %171 = sbr.rel (0) target = $region32
            $region31: #{mixconv2d_forward.2} parent=27 // pred_region
              loop: start=0, step=1, limit=1
              $region33: #{mixconv2d_forward.2} parent=31 // loop_pre_header
                _
              $region34: #{mixconv2d_forward.2} parent=31 // loop_header
                %s173 = sphi 0, %s177
                %p174 = scmp.ge.s32.totalorder %s173, 1
                %s178 = sphi %s167, %s167
                %s179 = sphi %s164, %s164
              $region35: #{mixconv2d_forward.2} parent=31 // loop_header_branch
                %176 = sbr.rel (%p174) target = $region39
              $region36: #{mixconv2d_forward.2} parent=31 // loop_body
                %v180 = vld [vmem:[%s178] sm:$0xff]
                %181 = vst [vmem:[%s179] sm:$0xff] %v180
                %v182 = vld [vmem:[%s178 + $0x8] sm:$0xff]
                %183 = vst [vmem:[%s179 + $0x8] sm:$0xff] %v182
                %v184 = vld [vmem:[%s178 + $0x20] sm:$0xff]
                %185 = vst [vmem:[%s179 + $0x10] sm:$0xff] %v184
                %v186 = vld [vmem:[%s178 + $0x28] sm:$0xff]
                %187 = vst [vmem:[%s179 + $0x18] sm:$0xff] %v186
                %v188 = vld [vmem:[%s178 + $0x40] sm:$0xff]
                %189 = vst [vmem:[%s179 + $0x20] sm:$0xff] %v188
                %v190 = vld [vmem:[%s178 + $0x48] sm:$0xff]
                %191 = vst [vmem:[%s179 + $0x28] sm:$0xff] %v190
                %v192 = vld [vmem:[%s178 + $0x60] sm:$0xff]
                %193 = vst [vmem:[%s179 + $0x30] sm:$0xff] %v192
                %v194 = vld [vmem:[%s178 + $0x68] sm:$0xff]
                %195 = vst [vmem:[%s179 + $0x38] sm:$0xff] %v194
                %v196 = vld [vmem:[%s178 + $0x80] sm:$0xff]
                %197 = vst [vmem:[%s179 + $0x40] sm:$0xff] %v196
                %v198 = vld [vmem:[%s178 + $0x88] sm:$0xff]
                %199 = vst [vmem:[%s179 + $0x48] sm:$0xff] %v198
              $region37: #{mixconv2d_forward.2} parent=31 // loop_footer
                %s177 = sadd.s32 1, %s173
              $region38: #{mixconv2d_forward.2} parent=31 // loop_footer_branch
                %172 = sbr.rel target = $region34
              $region39: #{mixconv2d_forward.2} parent=31 // loop_exit
                _
            $region32: #{mixconv2d_forward.2} parent=27 // pred_fallthru
              _
            // Predicated region
            $region40: #{mixconv2d_forward.2} parent=27 // pred_check
              _
            $region41: #{mixconv2d_forward.2} parent=27 // pred_check_branch
              %201 = sbr.rel target = $region43
            $region42: #{mixconv2d_forward.2} parent=27 // pred_region
              _
            $region43: #{mixconv2d_forward.2} parent=27 // pred_fallthru
              _
          $region28: #{mixconv2d_forward.2} parent=23 // pred_fallthru
            _
          %202 = vnop
        $region24: #{mixconv2d_forward.2} parent=19 // pred_fallthru
          _
      $region20: #{mixconv2d_forward.2} parent=5 // pred_fallthru
        _
      %p203 = scmp.le.s32.totalorder 1, %s11
      %p204 = scmp.lt.s32.totalorder %s11, 3
      %p205 = pnand %p203, %p204
      %p206 = pneg %p205
      // Predicated region
      $region44: #{mixconv2d_forward.2} parent=5 // pred_check
        _
      $region45: #{mixconv2d_forward.2} parent=5 // pred_check_branch
        %208 = sbr.rel (%p205) target = $region47
      $region46: #{mixconv2d_forward.2} parent=5 // pred_region
        %s209 = ssub.s32 %s11, 1
        %s210 = sand.u32 %s45, 1
        %s211 = sand.u32 %s45, 1
        %s212 = smul.addr %s211, 80
        %s213 = scalar_lea.vmem [#allocation2], %s212
        // Predicated region
        $region48: #{mixconv2d_forward.2} parent=46 // pred_check
          %p214 = pneg %p58
        $region49: #{mixconv2d_forward.2} parent=46 // pred_check_branch
          %216 = sbr.rel (%p214) target = $region51
        $region50: #{mixconv2d_forward.2} parent=46 // pred_region
          _
        $region51: #{mixconv2d_forward.2} parent=46 // pred_fallthru
          _
        %p217 = pneg %p32
        %p218 = pneg %p29
        %s219 = sand.u32 %s45, 1
        %s220 = sand.u32 %s45, 1
        %s221 = smul.addr %s220, 80
        %s222 = scalar_lea.vmem [#allocation2], %s221
        %p223 = pneg %p58
        %p224 = pneg %p55
        %p225 = pneg %p84
        %p226 = pneg %p81
        %s227 = smul.u32 2, %s16
        %p228 = scmp.lt.s32.totalorder %s227, 3
        %s229 = scalar_select %p228, %s227, 3
        %s230 = smul.addr %s229, 8
        %s231 = scalar_lea.vmem %s2, %s230
        %p232 = pneg %p110
        %p233 = pneg %p107
        %p234 = scmp.lt.s32.totalorder %s16, 1
        %s235 = scalar_select %p234, %s16, 1
        %s236 = smul.addr %s235, 8
        %s237 = scalar_lea.vmem %s3, %s236
        %p238 = pneg %p136
        %p239 = pneg %p133
        %p240 = scmp.lt.s32.totalorder %s16, 1
        %s241 = scalar_select %p240, %s16, 1
        %s242 = smul.addr %s241, 8
        %s243 = scalar_lea.vmem %s4, %s242
        %s244 = smul.u32 2, %s16
        %s245 = smul.u32 2, %s16
        %p246 = scmp.lt.s32.totalorder %s245, 3
        %s247 = scalar_select %p246, %s245, 3
        %s248 = smul.addr %s247, 8
        %s249 = scalar_lea.vmem %s2, %s248
        %s250 = smul.u32 2, %s16
        %p251 = scmp.lt.s32.totalorder %s16, 1
        %s252 = scalar_select %p251, %s16, 1
        %s253 = smul.addr %s252, 8
        %s254 = scalar_lea.vmem %s3, %s253
        %p255 = scmp.lt.s32.totalorder %s16, 1
        %s256 = scalar_select %p255, %s16, 1
        %s257 = smul.addr %s256, 8
        %s258 = scalar_lea.vmem %s4, %s257
        %v259 = vld [vmem:[%s0] sm:$0xff]
        %v260 = vld [vmem:[%s213] sm:$0xff]
        %v261 = vld [vmem:[%s213 + $0x8] sm:$0xff]
        %v262 = vld [vmem:[%s213 + $0x10] sm:$0xff]
        %v263 = vld [vmem:[%s213 + $0x18] sm:$0xff]
        %v264 = vld [vmem:[%s213 + $0x20] sm:$0xff]
        %v265 = vld [vmem:[%s213 + $0x28] sm:$0xff]
        %v266 = vld [vmem:[%s213 + $0x30] sm:$0xff]
        %v267 = vld [vmem:[%s213 + $0x38] sm:$0xff]
        %v268 = vld [vmem:[%s213 + $0x40] sm:$0xf]
        %v269 = vld [vmem:[%s213 + $0x48] sm:$0xf]
        %vm270 = vcmask 293888
        %v272 = vsel %vm270, %v259, 0
        %vm274 = vcmask 1043456
        %v276 = vsel %vm274, %v268, 0
        %v279 = vsel %vm274, %v269, 0
        %281 = vmatprep.subr.mxu0 %v261
        %282 = vmatpush1.msra.mxu0 %v260
        %283 = vmatprep.subr.mxu0 %v263
        %284 = vmatpush1.msra.mxu0 %v262
        %285 = vmatprep.subr.mxu0 %v265
        %286 = vmatpush1.msra.mxu0 %v264
        %287 = vmatprep.subr.mxu0 %v267
        %288 = vmatpush1.msra.mxu0 %v266
        %289 = vmatprep.subr.mxu0 %v279
        %290 = vmatpush1.msra.mxu0 %v276
        %291 = vmatprep.subr.mxu0 0.0
        %292 = vmatpush1.msra.mxu0 0.0
        %293 = vmatprep.subr.mxu0 0.0
        %294 = vmatpush1.msra.mxu0 0.0
        %295 = vmatprep.subr.mxu0 0.0
        %296 = vmatpush1.msra.mxu0 0.0
        %297 = vmatprep.subr.mxu0 0.0
        %298 = vmatpush1.msra.mxu0 0.0
        %299 = vmatprep.subr.mxu0 0.0
        %300 = vmatpush1.msra.mxu0 0.0
        %301 = vmatprep.subr.mxu0 0.0
        %302 = vmatpush1.msra.mxu0 0.0
        %303 = vmatprep.subr.mxu0 0.0
        %304 = vmatpush1.msra.mxu0 0.0
        %305 = vmatprep.subr.mxu0 0.0
        %306 = vmatpush1.msra.mxu0 0.0
        %307 = vmatprep.subr.mxu0 0.0
        %308 = vmatpush1.msra.mxu0 0.0
        %309 = vmatprep.subr.mxu0 0.0
        %310 = vmatpush1.msra.mxu0 0.0
        %311 = vmatprep.subr.mxu0 0.0
        %312 = vmatpush1.msra.mxu0 0.0
        %313 = vmatprep.subr.mxu0 0.0
        %314 = vmatpush1.msra.mxu0 0.0
        %315 = vmatprep.subr.mxu0 0.0
        %316 = vmatpush1.msra.mxu0 0.0
        %317 = vmatprep.subr.mxu0 0.0
        %318 = vmatpush1.msra.mxu0 0.0
        %319 = vmatprep.subr.mxu0 0.0
        %320 = vmatpush1.msra.mxu0 0.0
        %321 = vmatprep.subr.mxu0 0.0
        %322 = vmatpush1.msra.mxu0 0.0
        %323 = vmatprep.subr.mxu0 0.0
        %324 = vmatpush1.msra.mxu0 0.0
        %325 = vmatprep.subr.mxu0 0.0
        %326 = vmatpush1.msra.mxu0 0.0
        %327 = vmatprep.subr.mxu0 0.0
        %328 = vmatpush1.msra.mxu0 0.0
        %329 = vmatprep.subr.mxu0 0.0
        %330 = vmatpush1.msra.mxu0 0.0
        %331 = vmatprep.subr.mxu0 0.0
        %332 = vmatpush1.msra.mxu0 0.0
        %333 = vmatprep.subr.mxu0 0.0
        %334 = vmatpush1.msra.mxu0 0.0
        %335 = vmatprep.subr.mxu0 0.0
        %336 = vmatpush1.msra.mxu0 0.0
        %337 = vmatprep.subr.mxu0 0.0
        %338 = vmatpush1.msra.mxu0 0.0
        %339 = vmatprep.subr.mxu0 0.0
        %340 = vmatpush1.msra.mxu0 0.0
        %341 = vmatprep.subr.mxu0 0.0
        %342 = vmatpush1.msra.mxu0 0.0
        %343 = vmatprep.subr.mxu0 0.0
        %344 = vmatpush1.msra.mxu0 0.0
        %345 = vmatprep.mubr.f32.mxu0 0.0
        %346 = vmatmul.mubr.f32.gmra.mrb[0].mxu0 %v272
        %v347 = vpop.f32.mrb[0].mxu0
        %v348 = vadd.f32 0.0, %v347
        %v349 = vpop.f32.mrb[0].mxu0
        %v350 = vadd.f32 0.0, %v349
        %351 = vdwg.mxu0
        %352 = vst [vmem:[%s249] sm:$0xff] %v348
        %353 = vst [vmem:[%s249 + $0x8] sm:$0xff] %v350
        %v354 = vadd.f32 %v348, %v350
        %355 = vadd.xlane.f32.xlu0 %v354
        %v356 = vpop.xlane.xlu0 %355
        %vm357 = vcmask 7168
        %358 = vst.msk [vmem:[%s254] sm:$0xff] %vm357, %v356
        %v359 = vmul.f32 %v348, %v348
        %v360 = vmul.f32 %v350, %v350
        %v361 = vadd.f32 %v359, %v360
        %362 = vadd.xlane.f32.xlu0 %v361
        %v363 = vpop.xlane.xlu0 %362
        %364 = vst.msk [vmem:[%s258] sm:$0xff] %vm357, %v363
        %s365 = smul.u32 2, %s16
        %p366 = scmp.lt.s32.totalorder %s365, 3
        %s367 = scalar_select %p366, %s365, 3
        %s368 = smul.addr %s367, 8
        %s369 = scalar_lea.vmem %s2, %s368
        %p370 = scmp.lt.s32.totalorder %s16, 1
        %s371 = scalar_select %p370, %s16, 1
        %s372 = smul.addr %s371, 8
        %s373 = scalar_lea.vmem %s3, %s372
        %p374 = scmp.lt.s32.totalorder %s16, 1
        %s375 = scalar_select %p374, %s16, 1
        %s376 = smul.addr %s375, 8
        %s377 = scalar_lea.vmem %s4, %s376
        // Predicated region
        $region52: #{mixconv2d_forward.2} parent=46 // pred_check
          %p378 = pneg %p81
        $region53: #{mixconv2d_forward.2} parent=46 // pred_check_branch
          %380 = sbr.rel (%p378) target = $region55
        $region54: #{mixconv2d_forward.2} parent=46 // pred_region
          %s381 = smul.u32 2, %s16
        $region55: #{mixconv2d_forward.2} parent=46 // pred_fallthru
          _
        // Predicated region
        $region56: #{mixconv2d_forward.2} parent=46 // pred_check
          %p382 = pneg %p107
        $region57: #{mixconv2d_forward.2} parent=46 // pred_check_branch
          %384 = sbr.rel (%p382) target = $region59
        $region58: #{mixconv2d_forward.2} parent=46 // pred_region
          _
        $region59: #{mixconv2d_forward.2} parent=46 // pred_fallthru
          _
        // Predicated region
        $region60: #{mixconv2d_forward.2} parent=46 // pred_check
          %p385 = pneg %p133
        $region61: #{mixconv2d_forward.2} parent=46 // pred_check_branch
          %387 = sbr.rel (%p385) target = $region63
        $region62: #{mixconv2d_forward.2} parent=46 // pred_region
          _
        $region63: #{mixconv2d_forward.2} parent=46 // pred_fallthru
          _
      $region47: #{mixconv2d_forward.2} parent=5 // pred_fallthru
        _
      %p388 = scmp.le.s32.totalorder 2, %s11
      // Predicated region
      $region64: #{mixconv2d_forward.2} parent=5 // pred_check
        %p389 = pneg %p388
      $region65: #{mixconv2d_forward.2} parent=5 // pred_check_branch
        %391 = sbr.rel (%p389) target = $region67
      $region66: #{mixconv2d_forward.2} parent=5 // pred_region
        %s392 = ssub.s32 %s11, 2
        // Predicated region
        $region68: #{mixconv2d_forward.2} parent=66 // pred_check
          %p393 = pneg %p87
        $region69: #{mixconv2d_forward.2} parent=66 // pred_check_branch
          %395 = sbr.rel (%p393) target = $region71
        $region70: #{mixconv2d_forward.2} parent=66 // pred_region
          %s396 = smul.u32 2, %s17
          %p397 = scmp.lt.s32.totalorder %s396, 3
          %s398 = scalar_select %p397, %s396, 3
          %s399 = smul.addr %s398, 8
          %s400 = scalar_lea.vmem %s2, %s399
        $region71: #{mixconv2d_forward.2} parent=66 // pred_fallthru
          _
        // Predicated region
        $region72: #{mixconv2d_forward.2} parent=66 // pred_check
          %p401 = pneg %p113
        $region73: #{mixconv2d_forward.2} parent=66 // pred_check_branch
          %403 = sbr.rel (%p401) target = $region75
        $region74: #{mixconv2d_forward.2} parent=66 // pred_region
          %p404 = scmp.lt.s32.totalorder %s17, 1
          %s405 = scalar_select %p404, %s17, 1
          %s406 = smul.addr %s405, 8
          %s407 = scalar_lea.vmem %s3, %s406
        $region75: #{mixconv2d_forward.2} parent=66 // pred_fallthru
          _
        // Predicated region
        $region76: #{mixconv2d_forward.2} parent=66 // pred_check
          %p408 = pneg %p139
        $region77: #{mixconv2d_forward.2} parent=66 // pred_check_branch
          %410 = sbr.rel (%p408) target = $region79
        $region78: #{mixconv2d_forward.2} parent=66 // pred_region
          %p411 = scmp.lt.s32.totalorder %s17, 1
          %s412 = scalar_select %p411, %s17, 1
          %s413 = smul.addr %s412, 8
          %s414 = scalar_lea.vmem %s4, %s413
        $region79: #{mixconv2d_forward.2} parent=66 // pred_fallthru
          _
      $region67: #{mixconv2d_forward.2} parent=5 // pred_fallthru
        _
    $region6: #{mixconv2d_forward.2} parent=1 // loop_footer
      %s15 = sadd.s32 1, %s11
    $region7: #{mixconv2d_forward.2} parent=1 // loop_footer_branch
      %10 = sbr.rel target = $region3
    $region8: #{mixconv2d_forward.2} parent=1 // loop_exit
      _

</llo_original>
